<compile_context>
chip_gen: v6e
topology: v6e:2x2x1
jax: 0.10.0
libtpu: 0.0.40
codegen_flags: <defaults>
</compile_context>

<pallas_src>
import jax
import jax.numpy as jnp
from jax.experimental import pallas as pl
from jax.experimental.pallas import tpu as pltpu


def _round_up(x, m):
    return ((x + m - 1) // m) * m


def simple_dnn_kernel(x_ref, w1_ref, shift_ref, w2_ref, b2_ref, o_ref):
    # hidden1: Linear + BatchNorm1d (eval, pre-folded) + Dropout (eval: identity) + ReLU.
    # bf16 cast of the batch tile happens here, on VMEM data, not in the wrapper.
    x = x_ref[...].astype(w1_ref.dtype)
    h = jnp.dot(x, w1_ref[...], preferred_element_type=jnp.float32)
    h = jnp.maximum(h + shift_ref[...], 0.0)
    # head: Linear (bf16 operands, f32 accumulation on the MXU).  w2 is padded to
    # 128 output lanes for a dense MXU tile; slice down to the real out_dim before
    # the compact (masked) store so the HBM writeback stays small.
    out = jnp.dot(h.astype(w2_ref.dtype), w2_ref[...],
                  preferred_element_type=jnp.float32)
    out_dim = o_ref.shape[-1]
    o_ref[...] = (out[:, :out_dim] + b2_ref[...]).astype(o_ref.dtype)
    # TODO(synk): training-mode Dropout / batch-stat BatchNorm not implemented
    # (eval-mode inference semantics only).


def fold_params(params, eps=1e-5, compute_dtype=jnp.bfloat16):
    """Fold eval-mode BN + first-layer bias into (w1, shift).

    Only the *hidden* dim is zero-padded to a multiple of 128 (lane-dense MXU
    operands); the input dim (contraction of matmul 1) and the real output dim
    are left compact so x and the result need no HBM-side padding.
    """
    w1, b1 = params["w1"], params["b1"]                    # w1: [D_in, H], b1: [1, H]
    gamma, beta = params["gamma"], params["beta"]
    mean, var = params["running_mean"], params["running_var"]
    w2, b2 = params["w2"], params["b2"]                    # w2: [H, D_out], b2: [1, D_out]

    scale = gamma / jnp.sqrt(var + eps)                    # [1, H]
    w1_f = w1 * scale                                      # BN scale folded into columns
    shift = (b1 - mean) * scale + beta                     # folded bias/shift [1, H]

    d_in, hidden = w1.shape
    out_dim = w2.shape[1]
    hid_p = _round_up(hidden, 128)
    out_p = _round_up(out_dim, 128)

    w1_p = jnp.zeros((d_in, hid_p), jnp.float32).at[:, :hidden].set(w1_f)
    shift_p = jnp.zeros((1, hid_p), jnp.float32).at[:, :hidden].set(shift)
    w2_p = jnp.zeros((hid_p, out_p), jnp.float32).at[:hidden, :out_dim].set(w2)

    return {
        "w1": w1_p.astype(compute_dtype),    # [D_in, H_p]    bf16
        "shift": shift_p,                    # [1, H_p]       f32 (added post-matmul)
        "w2": w2_p.astype(compute_dtype),    # [H_p, D_out_p] bf16 (padded MXU tile)
        "b2": b2,                            # [1, D_out]     f32 (compact)
    }


def simple_dnn_forward(x, folded, *, tm_max=1024):
    """x: [B, input_dim] float32. folded: output of fold_params."""
    B, d_in = x.shape
    w1, shift, w2, b2 = folded["w1"], folded["shift"], folded["w2"], folded["b2"]
    assert w1.shape[0] == d_in
    hid_p = w1.shape[1]
    out_p = w2.shape[1]
    out_dim = b2.shape[1]

    # Batch tile: multiple of 16 rows (bf16 sublane packing).  Aim for >=4 grid
    # steps once B is big enough so both v7x TensorCores get work and the DMA
    # pipeline has depth; cap at tm_max rows (amortizes per-step overhead while
    # staying tiny vs. every generation's scoped-VMEM limit).
    TM = max(16, min(tm_max, _round_up(pl.cdiv(B, 4), 16)))
    grid = (pl.cdiv(B, TM),)

    # Advisory cost hint for XLA's scheduler around this small, mem-bound call.
    cost = pl.CostEstimate(
        flops=2 * B * (d_in * hid_p + hid_p * out_p),
        transcendentals=0,
        bytes_accessed=int(
            B * d_in * x.dtype.itemsize          # x read
            + B * out_dim * 4                    # compact f32 output write
            + w1.size * w1.dtype.itemsize
            + w2.size * w2.dtype.itemsize
            + shift.size * 4 + b2.size * 4),
    )

    return pl.pallas_call(
        simple_dnn_kernel,
        out_shape=jax.ShapeDtypeStruct((B, out_dim), jnp.float32),
        grid_spec=pl.GridSpec(
            grid=grid,
            in_specs=[
                # x streamed over the batch, unpadded: last block dim == full
                # d_in, so no HBM-side pad/cast copy of x is needed.  Edge block
                # rows beyond B are boundary-padded (undefined) and only affect
                # output rows that the pipeline masks off.
                pl.BlockSpec((TM, d_in), lambda i: (i, 0)),
                # Weights/biases: constant index_map -> fetched once, VMEM-resident.
                pl.BlockSpec((d_in, hid_p), lambda i: (0, 0)),
                pl.BlockSpec((1, hid_p), lambda i: (0, 0)),
                pl.BlockSpec((hid_p, out_p), lambda i: (0, 0)),
                pl.BlockSpec((1, out_dim), lambda i: (0, 0)),
            ],
            # Compact output: last block dim == real out_dim (masked vst, but
            # ~16x less HBM writeback than a 128-lane-padded f32 slab).
            out_specs=pl.BlockSpec((TM, out_dim), lambda i: (i, 0)),
        ),
        compiler_params=pltpu.CompilerParams(
            # Megacore sharding of the batch axis on v7x; neutral on v5e/v6e.
            dimension_semantics=("parallel",),
            # VMEM use is < 1 MiB at TM=1024 with these dims, so the default
            # scoped limit is plenty; no vmem_limit_bytes override needed.
        ),
        cost_estimate=cost,
    )(x, w1, shift, w2, b2)


def init_params(key, input_dim, hidden_dim, output_dim):
    """Deterministic synthetic parameters matching SimpleDNN's shapes.

    PyTorch nn.Linear stores weight as [out, in]; we pre-transpose to [in, out].
    """
    ks = jax.random.split(key, 6)
    w1 = jax.random.normal(ks[0], (input_dim, hidden_dim), jnp.float32) * 0.05
    b1 = jax.random.normal(ks[1], (1, hidden_dim), jnp.float32) * 0.05
    gamma = 1.0 + 0.1 * jax.random.normal(ks[2], (1, hidden_dim), jnp.float32)
    beta = 0.1 * jax.random.normal(ks[3], (1, hidden_dim), jnp.float32)
    running_mean = jnp.zeros((1, hidden_dim), jnp.float32)
    running_var = jnp.ones((1, hidden_dim), jnp.float32)
    w2 = jax.random.normal(ks[4], (hidden_dim, output_dim), jnp.float32) * 0.05
    b2 = jax.random.normal(ks[5], (1, output_dim), jnp.float32) * 0.05
    return {"w1": w1, "b1": b1, "gamma": gamma, "beta": beta,
            "running_mean": running_mean, "running_var": running_var,
            "w2": w2, "b2": b2}


if __name__ == "__main__":
    # SimpleDNN(input_dim=32, output_dim=8, layers_dims=[64], dropouts=0.1)
    # B=200 deliberately not a multiple of the batch tile -> exercises the
    # boundary-masked edge block and a multi-step (grid=4) batch pipeline.
    B, input_dim, hidden_dim, output_dim = 200, 32, 64, 8

    key = jax.random.PRNGKey(0)
    kx, kp = jax.random.split(key)
    x = jax.random.normal(kx, (B, input_dim), jnp.float32)
    params = init_params(kp, input_dim, hidden_dim, output_dim)
    folded = fold_params(params)

    out = simple_dnn_forward(x, folded)
    out = jax.block_until_ready(out)
    assert out.shape == (B, output_dim)

    # Reference check in plain JAX using the same bf16-rounded operands
    # (isolates kernel correctness from the bf16 rounding of inputs/weights).
    x_bf = x.astype(jnp.bfloat16).astype(jnp.float32)
    w1_32 = folded["w1"].astype(jnp.float32)
    w2_32 = folded["w2"].astype(jnp.float32)
    h_ref = jnp.maximum(x_bf @ w1_32 + folded["shift"], 0.0)
    ref_full = h_ref.astype(jnp.bfloat16).astype(jnp.float32) @ w2_32
    ref = ref_full[:, :output_dim] + folded["b2"]
    assert jnp.allclose(out, ref, atol=2e-3, rtol=2e-3), \
        float(jnp.max(jnp.abs(out - ref)))

    # Loose sanity check against the full-f32 eval-mode SimpleDNN math.
    scale = params["gamma"] / jnp.sqrt(params["running_var"] + 1e-5)
    shift_f32 = (params["b1"] - params["running_mean"]) * scale + params["beta"]
    h32 = jnp.maximum((x @ params["w1"]) * scale + shift_f32, 0.0)
    ref32 = h32 @ params["w2"] + params["b2"]
    assert jnp.allclose(out, ref32, atol=5e-2, rtol=5e-2)

    print("KERNEL_OK")
</pallas_src>

<mosaic_0001>
module attributes {stable_mosaic.version = 11 : i64} {
  func.func @simple_dnn_kernel(%arg0: i32, %arg1: memref<64x32xf32, #tpu.memory_space<vmem>>, %arg2: memref<32x128xbf16, #tpu.memory_space<vmem>>, %arg3: memref<1x128xf32, #tpu.memory_space<vmem>>, %arg4: memref<128x128xbf16, #tpu.memory_space<vmem>>, %arg5: memref<1x8xf32, #tpu.memory_space<vmem>>, %arg6: memref<64x8xf32, #tpu.memory_space<vmem>>) attributes {dimension_semantics = [#tpu.dimension_semantics<parallel>], iteration_bounds = array<i64: 4>, scalar_prefetch = 0 : i64, scratch_operands = 0 : i64, tpu.core_type = #tpu.core_type<tc>, window_params = [{transform_indices = @transform_0, window_bounds = array<i64: 64, 32>}, {pipeline_mode = #tpu.pipeline_mode<synchronous>, transform_indices = @transform_1, window_bounds = array<i64: 32, 128>}, {pipeline_mode = #tpu.pipeline_mode<synchronous>, transform_indices = @transform_2, window_bounds = array<i64: 1, 128>}, {pipeline_mode = #tpu.pipeline_mode<synchronous>, transform_indices = @transform_3, window_bounds = array<i64: 128, 128>}, {pipeline_mode = #tpu.pipeline_mode<synchronous>, transform_indices = @transform_4, window_bounds = array<i64: 1, 8>}, {transform_indices = @transform_5, window_bounds = array<i64: 64, 8>}]} {
    %c0 = arith.constant 0 : index
    %c0_0 = arith.constant 0 : index
    %0 = vector.load %arg1[%c0, %c0_0] : memref<64x32xf32, #tpu.memory_space<vmem>>, vector<64x32xf32>
    %1 = arith.truncf %0 : vector<64x32xf32> to vector<64x32xbf16>
    %c0_1 = arith.constant 0 : index
    %c0_2 = arith.constant 0 : index
    %2 = vector.load %arg2[%c0_1, %c0_2] : memref<32x128xbf16, #tpu.memory_space<vmem>>, vector<32x128xbf16>
    %cst = arith.constant dense<0.000000e+00> : vector<64x128xf32>
    %3 = tpu.matmul %1, %2, %cst {dimension_numbers = #tpu.dot_dimension_numbers<[1], [0], [0], [1], [0, 0, 1, 1], [], []>} : vector<64x32xbf16>, vector<32x128xbf16>, vector<64x128xf32> -> vector<64x128xf32>
    %c0_3 = arith.constant 0 : index
    %c0_4 = arith.constant 0 : index
    %4 = vector.load %arg3[%c0_3, %c0_4] : memref<1x128xf32, #tpu.memory_space<vmem>>, vector<1x128xf32>
    %5 = vector.broadcast %4 : vector<1x128xf32> to vector<64x128xf32>
    %6 = arith.addf %3, %5 : vector<64x128xf32>
    %cst_5 = arith.constant 0.000000e+00 : f32
    %7 = vector.broadcast %cst_5 : f32 to vector<64x128xf32>
    %8 = arith.maximumf %6, %7 : vector<64x128xf32>
    %9 = arith.truncf %8 : vector<64x128xf32> to vector<64x128xbf16>
    %c0_6 = arith.constant 0 : index
    %c0_7 = arith.constant 0 : index
    %10 = vector.load %arg4[%c0_6, %c0_7] : memref<128x128xbf16, #tpu.memory_space<vmem>>, vector<128x128xbf16>
    %cst_8 = arith.constant dense<0.000000e+00> : vector<64x128xf32>
    %11 = tpu.matmul %9, %10, %cst_8 {dimension_numbers = #tpu.dot_dimension_numbers<[1], [0], [0], [1], [0, 0, 1, 1], [], []>} : vector<64x128xbf16>, vector<128x128xbf16>, vector<64x128xf32> -> vector<64x128xf32>
    %12 = vector.extract_strided_slice %11 {offsets = [0, 0], sizes = [64, 8], strides = [1, 1]} : vector<64x128xf32> to vector<64x8xf32>
    %c0_9 = arith.constant 0 : index
    %c0_10 = arith.constant 0 : index
    %13 = vector.load %arg5[%c0_9, %c0_10] : memref<1x8xf32, #tpu.memory_space<vmem>>, vector<1x8xf32>
    %14 = vector.broadcast %13 : vector<1x8xf32> to vector<64x8xf32>
    %15 = arith.addf %12, %14 : vector<64x8xf32>
    %c0_11 = arith.constant 0 : index
    %c0_12 = arith.constant 0 : index
    %16 = vector.load %arg6[%c0_11, %c0_12] : memref<64x8xf32, #tpu.memory_space<vmem>>, vector<64x8xf32>
    tpu.vector_store %arg6[%c0_11, %c0_12], %15 {strides = array<i32>} : memref<64x8xf32, #tpu.memory_space<vmem>>, vector<64x8xf32>,
    return
  }
  func.func @transform_0(%arg0: i32) -> (i32, i32) {
    %c0_i32 = arith.constant 0 : i32
    %c0_i32_0 = arith.constant 0 : i32
    return %arg0, %c0_i32 : i32, i32
  }
  func.func @transform_1(%arg0: i32) -> (i32, i32) {
    %c0_i32 = arith.constant 0 : i32
    %c0_i32_0 = arith.constant 0 : i32
    %c0_i32_1 = arith.constant 0 : i32
    return %c0_i32, %c0_i32_0 : i32, i32
  }
  func.func @transform_2(%arg0: i32) -> (i32, i32) {
    %c0_i32 = arith.constant 0 : i32
    %c0_i32_0 = arith.constant 0 : i32
    %c0_i32_1 = arith.constant 0 : i32
    return %c0_i32, %c0_i32_0 : i32, i32
  }
  func.func @transform_3(%arg0: i32) -> (i32, i32) {
    %c0_i32 = arith.constant 0 : i32
    %c0_i32_0 = arith.constant 0 : i32
    %c0_i32_1 = arith.constant 0 : i32
    return %c0_i32, %c0_i32_0 : i32, i32
  }
  func.func @transform_4(%arg0: i32) -> (i32, i32) {
    %c0_i32 = arith.constant 0 : i32
    %c0_i32_0 = arith.constant 0 : i32
    %c0_i32_1 = arith.constant 0 : i32
    return %c0_i32, %c0_i32_0 : i32, i32
  }
  func.func @transform_5(%arg0: i32) -> (i32, i32) {
    %c0_i32 = arith.constant 0 : i32
    %c0_i32_0 = arith.constant 0 : i32
    return %arg0, %c0_i32 : i32, i32
  }
}

</mosaic_0001>

<llo_original>
// kernel: tpu_custom_call.1
$region0: #{tpu_custom_call.1}
  #allocation0 [shape = 'u32[]', space=smem, size = 0x4, offset = 0x4, fixed_abs, tag = 'smem constant byte address 0x4 - core index']
  #allocation1 [shape = 'u32[144,128]{1,0:T(1,128)}', space=vmem, size = 0x12000, scoped, tag = 'internal scratch']
  %s0 = inlined_call_operand.vmem [shape: f32[200,32], index: 0, kind: input, shape index: {}]
  %s1 = inlined_call_operand.vmem [shape: bf16[32,128], index: 1, kind: input, shape index: {}]
  %s2 = inlined_call_operand.vmem [shape: f32[1,128], index: 2, kind: input, shape index: {}]
  %s3 = inlined_call_operand.vmem [shape: bf16[128,128], index: 3, kind: input, shape index: {}]
  %s4 = inlined_call_operand.vmem [shape: f32[1,8], index: 4, kind: input, shape index: {}]
  %s5 = inlined_call_operand.vmem [shape: f32[200,8], index: 5, kind: output, shape index: {}]
  %s6 = sld [smem:[#allocation0]]
  $region101: #{tpu_custom_call.1} parent=0
    _
  %s8 = ssub.s32 1, %s6
  %s9 = scalar_select 0, %s8, %s6
  $region1: #{tpu_custom_call.1} parent=0
    #allocation2 [shape = 'u8[65536]{0}', space=vmem, size = 0x10000, scoped, tag = 'output window, operand 0']
    loop: start=0, step=1, limit=6
    $region2: #{tpu_custom_call.1} parent=1 // loop_pre_header
      _
    $region3: #{tpu_custom_call.1} parent=1 // loop_header
      %s11 = sphi 0, %s15
      %p12 = scmp.ge.s32.totalorder %s11, 6
      %s21 = sphi 0, %s23
      %s24 = sphi 0, %s21
      %s25 = sphi 0, %s24
      %s41 = sphi 0, %s25
      %s45 = sphi 0, %s45
      %s47 = sphi 0, %s45
      %s48 = sphi 0, %s47
      %s62 = sphi 0, %s48
      %s66 = sphi 0, %s66
      %s68 = sphi 0, %s66
      %s69 = sphi 0, %s68
      %s83 = sphi 0, %s69
      %s87 = sphi 0, %s87
      %s89 = sphi 0, %s87
      %s90 = sphi 0, %s89
      %s104 = sphi 0, %s90
      %s108 = sphi 0, %s108
      %s110 = sphi 0, %s108
      %s111 = sphi 0, %s110
      %s125 = sphi 0, %s111
      %s131 = sphi 0, %s133
      %s134 = sphi 0, %s131
      %s135 = sphi 0, %s134
      %s151 = sphi 0, %s135
    $region4: #{tpu_custom_call.1} parent=1 // loop_header_branch
      %14 = sbr.rel (%p12) target = $region8
    $region5: #{tpu_custom_call.1} parent=1 // loop_body
      %s16 = ssub.s32 %s11, 1
      %s17 = ssub.s32 %s11, 2
      %s18 = sadd.s32 %s11, 1
      %s19 = ssub.s32 %s11, %s18
      %p20 = scmp.eq.s32.totalorder %s19, 0
      %s22 = sadd.s32 %s21, 1
      %s23 = scalar_select %p20, %s21, %s22
      %p26 = pneg %p20
      %p27 = scmp.eq.s32.totalorder %s11, 3
      %p28 = por %p26, %p27
      %p29 = scmp.ne.s32.totalorder %s21, %s24
      %p30 = scmp.eq.s32.totalorder %s11, 0
      %p31 = por %p29, %p30
      %p32 = scmp.ne.s32.totalorder %s21, %s24
      %p33 = scmp.eq.s32.totalorder %s16, 3
      %p34 = por %p32, %p33
      %p35 = scmp.ne.s32.totalorder %s24, %s25
      %p36 = scmp.eq.s32.totalorder %s16, 0
      %p37 = por %p35, %p36
      %p38 = scmp.ne.s32.totalorder %s24, %s25
      %p39 = scmp.eq.s32.totalorder %s17, 3
      %p40 = por %p38, %p39
      %p42 = scmp.ne.s32.totalorder %s25, %s41
      %p43 = scmp.eq.s32.totalorder %s17, 0
      %p44 = por %p42, %p43
      %s46 = sadd.s32 %s45, 1
      %p49 = scmp.eq.s32.totalorder %s11, 3
      %p50 = scmp.ne.s32.totalorder %s45, %s47
      %p51 = scmp.eq.s32.totalorder %s11, 0
      %p52 = por %p50, %p51
      %p53 = scmp.ne.s32.totalorder %s45, %s47
      %p54 = scmp.eq.s32.totalorder %s16, 3
      %p55 = por %p53, %p54
      %p56 = scmp.ne.s32.totalorder %s47, %s48
      %p57 = scmp.eq.s32.totalorder %s16, 0
      %p58 = por %p56, %p57
      %p59 = scmp.ne.s32.totalorder %s47, %s48
      %p60 = scmp.eq.s32.totalorder %s17, 3
      %p61 = por %p59, %p60
      %p63 = scmp.ne.s32.totalorder %s48, %s62
      %p64 = scmp.eq.s32.totalorder %s17, 0
      %p65 = por %p63, %p64
      %s67 = sadd.s32 %s66, 1
      %p70 = scmp.eq.s32.totalorder %s11, 3
      %p71 = scmp.ne.s32.totalorder %s66, %s68
      %p72 = scmp.eq.s32.totalorder %s11, 0
      %p73 = por %p71, %p72
      %p74 = scmp.ne.s32.totalorder %s66, %s68
      %p75 = scmp.eq.s32.totalorder %s16, 3
      %p76 = por %p74, %p75
      %p77 = scmp.ne.s32.totalorder %s68, %s69
      %p78 = scmp.eq.s32.totalorder %s16, 0
      %p79 = por %p77, %p78
      %p80 = scmp.ne.s32.totalorder %s68, %s69
      %p81 = scmp.eq.s32.totalorder %s17, 3
      %p82 = por %p80, %p81
      %p84 = scmp.ne.s32.totalorder %s69, %s83
      %p85 = scmp.eq.s32.totalorder %s17, 0
      %p86 = por %p84, %p85
      %s88 = sadd.s32 %s87, 1
      %p91 = scmp.eq.s32.totalorder %s11, 3
      %p92 = scmp.ne.s32.totalorder %s87, %s89
      %p93 = scmp.eq.s32.totalorder %s11, 0
      %p94 = por %p92, %p93
      %p95 = scmp.ne.s32.totalorder %s87, %s89
      %p96 = scmp.eq.s32.totalorder %s16, 3
      %p97 = por %p95, %p96
      %p98 = scmp.ne.s32.totalorder %s89, %s90
      %p99 = scmp.eq.s32.totalorder %s16, 0
      %p100 = por %p98, %p99
      %p101 = scmp.ne.s32.totalorder %s89, %s90
      %p102 = scmp.eq.s32.totalorder %s17, 3
      %p103 = por %p101, %p102
      %p105 = scmp.ne.s32.totalorder %s90, %s104
      %p106 = scmp.eq.s32.totalorder %s17, 0
      %p107 = por %p105, %p106
      %s109 = sadd.s32 %s108, 1
      %p112 = scmp.eq.s32.totalorder %s11, 3
      %p113 = scmp.ne.s32.totalorder %s108, %s110
      %p114 = scmp.eq.s32.totalorder %s11, 0
      %p115 = por %p113, %p114
      %p116 = scmp.ne.s32.totalorder %s108, %s110
      %p117 = scmp.eq.s32.totalorder %s16, 3
      %p118 = por %p116, %p117
      %p119 = scmp.ne.s32.totalorder %s110, %s111
      %p120 = scmp.eq.s32.totalorder %s16, 0
      %p121 = por %p119, %p120
      %p122 = scmp.ne.s32.totalorder %s110, %s111
      %p123 = scmp.eq.s32.totalorder %s17, 3
      %p124 = por %p122, %p123
      %p126 = scmp.ne.s32.totalorder %s111, %s125
      %p127 = scmp.eq.s32.totalorder %s17, 0
      %p128 = por %p126, %p127
      %s129 = ssub.s32 %s11, %s18
      %p130 = scmp.eq.s32.totalorder %s129, 0
      %s132 = sadd.s32 %s131, 1
      %s133 = scalar_select %p130, %s131, %s132
      %p136 = pneg %p130
      %p137 = scmp.eq.s32.totalorder %s11, 3
      %p138 = por %p136, %p137
      %p139 = scmp.ne.s32.totalorder %s131, %s134
      %p140 = scmp.eq.s32.totalorder %s11, 0
      %p141 = por %p139, %p140
      %p142 = scmp.ne.s32.totalorder %s131, %s134
      %p143 = scmp.eq.s32.totalorder %s16, 3
      %p144 = por %p142, %p143
      %p145 = scmp.ne.s32.totalorder %s134, %s135
      %p146 = scmp.eq.s32.totalorder %s16, 0
      %p147 = por %p145, %p146
      %p148 = scmp.ne.s32.totalorder %s134, %s135
      %p149 = scmp.eq.s32.totalorder %s17, 3
      %p150 = por %p148, %p149
      %p152 = scmp.ne.s32.totalorder %s135, %s151
      %p153 = scmp.eq.s32.totalorder %s17, 0
      %p154 = por %p152, %p153
      %p155 = scmp.le.s32.totalorder 1, %s11
      %p156 = scmp.lt.s32.totalorder %s11, 5
      %p157 = pnand %p155, %p156
      %p158 = pneg %p157
      // Predicated region
      $region9: #{tpu_custom_call.1} parent=5 // pred_check
        _
      $region10: #{tpu_custom_call.1} parent=5 // pred_check_branch
        %160 = sbr.rel (%p157) target = $region12
      $region11: #{tpu_custom_call.1} parent=5 // pred_region
        %s161 = ssub.s32 %s11, 1
        // Predicated region
        $region13: #{tpu_custom_call.1} parent=11 // pred_check
          %p162 = pneg %p58
        $region14: #{tpu_custom_call.1} parent=11 // pred_check_branch
          %164 = sbr.rel (%p162) target = $region16
        $region15: #{tpu_custom_call.1} parent=11 // pred_region
          _
        $region16: #{tpu_custom_call.1} parent=11 // pred_fallthru
          _
        // Predicated region
        $region17: #{tpu_custom_call.1} parent=11 // pred_check
          %p165 = pneg %p79
        $region18: #{tpu_custom_call.1} parent=11 // pred_check_branch
          %167 = sbr.rel (%p165) target = $region20
        $region19: #{tpu_custom_call.1} parent=11 // pred_region
          _
        $region20: #{tpu_custom_call.1} parent=11 // pred_fallthru
          _
        // Predicated region
        $region21: #{tpu_custom_call.1} parent=11 // pred_check
          %p168 = pneg %p100
        $region22: #{tpu_custom_call.1} parent=11 // pred_check_branch
          %170 = sbr.rel (%p168) target = $region24
        $region23: #{tpu_custom_call.1} parent=11 // pred_region
          _
        $region24: #{tpu_custom_call.1} parent=11 // pred_fallthru
          _
        // Predicated region
        $region25: #{tpu_custom_call.1} parent=11 // pred_check
          %p171 = pneg %p121
        $region26: #{tpu_custom_call.1} parent=11 // pred_check_branch
          %173 = sbr.rel (%p171) target = $region28
        $region27: #{tpu_custom_call.1} parent=11 // pred_region
          _
        $region28: #{tpu_custom_call.1} parent=11 // pred_fallthru
          _
      $region12: #{tpu_custom_call.1} parent=5 // pred_fallthru
        _
      %p174 = scmp.lt.s32.totalorder %s11, 4
      // Predicated region
      $region29: #{tpu_custom_call.1} parent=5 // pred_check
        %p175 = pneg %p174
      $region30: #{tpu_custom_call.1} parent=5 // pred_check_branch
        %177 = sbr.rel (%p175) target = $region32
      $region31: #{tpu_custom_call.1} parent=5 // pred_region
        // Predicated region
        $region33: #{tpu_custom_call.1} parent=31 // pred_check
          %p178 = pneg %p31
        $region34: #{tpu_custom_call.1} parent=31 // pred_check_branch
          %180 = sbr.rel (%p178) target = $region36
        $region35: #{tpu_custom_call.1} parent=31 // pred_region
          %s181 = smul.u32 8, %s11
          %s182 = ssub.s32 25, %s181
          %p183 = scmp.lt.s32.totalorder %s182, 8
          %s184 = scalar_select %p183, %s182, 8
          %s185 = smul.u32 128, %s184
          %p186 = scmp.lt.s32.totalorder %s181, 24
          %s187 = scalar_select %p186, %s181, 24
          %s188 = smul.addr %s187, 8
          %s189 = scalar_lea.vmem %s0, %s188
          %s190 = smul.u32 8, %s11
          %s191 = ssub.s32 25, %s190
          %p192 = scmp.lt.s32.totalorder %s191, 8
          %s193 = scalar_select %p192, %s191, 8
          %s194 = smul.u32 128, %s193
        $region36: #{tpu_custom_call.1} parent=31 // pred_fallthru
          _
      $region32: #{tpu_custom_call.1} parent=5 // pred_fallthru
        _
      %p195 = scmp.le.s32.totalorder 1, %s11
      %p196 = scmp.lt.s32.totalorder %s11, 5
      %p197 = pnand %p195, %p196
      %p198 = pneg %p197
      // Predicated region
      $region37: #{tpu_custom_call.1} parent=5 // pred_check
        _
      $region38: #{tpu_custom_call.1} parent=5 // pred_check_branch
        %200 = sbr.rel (%p197) target = $region40
      $region39: #{tpu_custom_call.1} parent=5 // pred_region
        %s201 = ssub.s32 %s11, 1
        %s202 = smul.u32 8, %s16
        %s203 = ssub.s32 25, %s202
        %p204 = scmp.lt.s32.totalorder %s203, 8
        %s205 = scalar_select %p204, %s203, 8
        %s206 = smul.u32 128, %s205
        %p207 = scmp.lt.s32.totalorder %s202, 24
        %s208 = scalar_select %p207, %s202, 24
        %s209 = smul.addr %s208, 8
        %s210 = scalar_lea.vmem %s0, %s209
        %p211 = pneg %p37
        %p212 = pneg %p34
        %p213 = pneg %p58
        %p214 = pneg %p55
        %p215 = pneg %p79
        %p216 = pneg %p76
        %p217 = pneg %p100
        %p218 = pneg %p97
        %p219 = pneg %p121
        %p220 = pneg %p118
        %p221 = pneg %p147
        %p222 = pneg %p144
        %s223 = sand.u32 %s134, 1
        %s224 = sand.u32 %s134, 1
        %s225 = smul.addr %s224, 64
        %s226 = scalar_lea.vmem [#allocation2], %s225
        %s227 = smul.u32 8, %s16
        %s228 = ssub.s32 25, %s227
        %p229 = scmp.lt.s32.totalorder %s228, 8
        %s230 = scalar_select %p229, %s228, 8
        %s231 = smul.u32 128, %s230
        %p232 = scmp.lt.s32.totalorder %s227, 24
        %s233 = scalar_select %p232, %s227, 24
        %s234 = smul.addr %s233, 8
        %s235 = scalar_lea.vmem %s0, %s234
        %s236 = smul.u32 8, %s16
        %s237 = ssub.s32 25, %s236
        %p238 = scmp.lt.s32.totalorder %s237, 8
        %s239 = scalar_select %p238, %s237, 8
        %s240 = smul.u32 128, %s239
        %s241 = smul.u32 8, %s16
        %s242 = ssub.s32 25, %s241
        %p243 = scmp.lt.s32.totalorder %s242, 8
        %s244 = scalar_select %p243, %s242, 8
        %s245 = smul.u32 128, %s244
        %v247 = vld [vmem:[%s235] sm:$0xff]
        %v248 = vld [vmem:[%s235 + $0x8] sm:$0xff]
        %v249 = vld [vmem:[%s235 + $0x10] sm:$0xff]
        %v250 = vld [vmem:[%s235 + $0x18] sm:$0xff]
        %v251 = vld [vmem:[%s235 + $0x20] sm:$0xff]
        %v252 = vld [vmem:[%s235 + $0x28] sm:$0xff]
        %v253 = vld [vmem:[%s235 + $0x30] sm:$0xff]
        %v254 = vld [vmem:[%s235 + $0x38] sm:$0xff]
        %v255 = vpack.c.bf16 %v248, %v247
        %v256 = vpack.c.bf16 %v250, %v249
        %v257 = vpack.c.bf16 %v252, %v251
        %v258 = vpack.c.bf16 %v254, %v253
        %v259 = vld [vmem:[%s1] sm:$0xf]
        %v260 = vld [vmem:[%s1 + $0x4] sm:$0xf]
        %v261 = vld [vmem:[%s1 + $0x8] sm:$0xf]
        %v262 = vld [vmem:[%s1 + $0xc] sm:$0xf]
        %v263 = vld [vmem:[%s2] sm:$0x1]
        %v265 = vlaneseq
        %v266 = vshrl.u32 %v265, 7
        %v267 = vsub.s32 0, %v266
        %v268 = vrot.slane %v263, %v267
        %v274 = vunpack.c.l.b16 %v259
        %v275 = vunpack.c.l.b16 %v260
        %v276 = vunpack.c.l.b16 %v261
        %v277 = vunpack.c.l.b16 %v262
        %v278 = vpack.c.b16 %v275, %v274
        %v279 = vpack.c.b16 %v277, %v276
        %vm282 = vcmask 261120
        %v284 = vsel %vm282, %v255, 0
        %v287 = vsel %vm282, %v256, 0
        %v290 = vsel %vm282, %v257, 0
        %v293 = vsel %vm282, %v258, 0
        %295 = vmatprep.subr.bf16.mxu0 0
        %296 = vmatpush1.bf16.msra.mxu0 0
        %297 = vmatprep.subr.bf16.mxu0 0
        %298 = vmatpush1.bf16.msra.mxu0 0
        %299 = vmatprep.subr.bf16.mxu0 0
        %300 = vmatpush1.bf16.msra.mxu0 0
        %301 = vmatprep.subr.bf16.mxu0 0
        %302 = vmatpush1.bf16.msra.mxu0 0
        %303 = vmatprep.subr.bf16.mxu0 0
        %304 = vmatpush1.bf16.msra.mxu0 0
        %305 = vmatprep.subr.bf16.mxu0 0
        %306 = vmatpush1.bf16.msra.mxu0 0
        %307 = vmatprep.subr.bf16.mxu0 0
        %308 = vmatpush1.bf16.msra.mxu0 %v279
        %309 = vmatprep.subr.bf16.mxu0 0
        %310 = vmatpush1.bf16.msra.mxu0 %v278
        %311 = vmatprep.subr.bf16.mxu0 0
        %312 = vmatpush2.bf16.msra.mxu0 0
        %313 = vmatprep.subr.bf16.mxu0 0
        %314 = vmatpush2.bf16.msra.mxu0 0
        %315 = vmatprep.subr.bf16.mxu0 0
        %316 = vmatpush2.bf16.msra.mxu0 0
        %317 = vmatprep.subr.bf16.mxu0 0
        %318 = vmatpush2.bf16.msra.mxu0 0
        %319 = vmatprep.subr.bf16.mxu0 0
        %320 = vmatpush2.bf16.msra.mxu0 0
        %321 = vmatprep.subr.bf16.mxu0 0
        %322 = vmatpush2.bf16.msra.mxu0 0
        %323 = vmatprep.subr.bf16.mxu0 0
        %324 = vmatpush2.bf16.msra.mxu0 0
        %325 = vmatprep.subr.bf16.mxu0 0
        %326 = vmatpush2.bf16.msra.mxu0 0
        %327 = vmatprep.mubr.bf16.mxu0 0
        %328 = vmatmul.mubr.bf16.gmra.mxu0 %v284
        %v329 = vpop.f32.mrf.mxu0
        %v330 = vadd.f32 %v268, %v329
        %v331 = vpop.f32.mrf.mxu0
        %v332 = vpop.f32.mrf.mxu0
        %v333 = vadd.f32 %v268, %v332
        %v334 = vpop.f32.mrf.mxu0
        %335 = vmatprep.mubr.bf16.mxu0 0
        %336 = vmatmul.mubr.bf16.gmra.mxu0 %v287
        %v337 = vpop.f32.mrf.mxu0
        %v338 = vadd.f32 %v268, %v337
        %v339 = vpop.f32.mrf.mxu0
        %v340 = vpop.f32.mrf.mxu0
        %v341 = vadd.f32 %v268, %v340
        %v342 = vpop.f32.mrf.mxu0
        %343 = vmatprep.mubr.bf16.mxu0 0
        %344 = vmatmul.mubr.bf16.gmra.mxu0 %v290
        %v345 = vpop.f32.mrf.mxu0
        %v346 = vadd.f32 %v268, %v345
        %v347 = vpop.f32.mrf.mxu0
        %v348 = vpop.f32.mrf.mxu0
        %v349 = vadd.f32 %v268, %v348
        %v350 = vpop.f32.mrf.mxu0
        %351 = vmatprep.mubr.bf16.mxu0 0
        %352 = vmatmul.mubr.bf16.gmra.mxu0 %v293
        %v353 = vpop.f32.mrf.mxu0
        %v354 = vadd.f32 %v268, %v353
        %v355 = vpop.f32.mrf.mxu0
        %v356 = vpop.f32.mrf.mxu0
        %v357 = vadd.f32 %v268, %v356
        %v358 = vpop.f32.mrf.mxu0
        %359 = vdwg.mxu0
        %v360 = vmax.f32 %v330, 0.0
        %v361 = vmax.f32 %v333, 0.0
        %v362 = vmax.f32 %v338, 0.0
        %v363 = vmax.f32 %v341, 0.0
        %v364 = vmax.f32 %v346, 0.0
        %v365 = vmax.f32 %v349, 0.0
        %v366 = vmax.f32 %v354, 0.0
        %v367 = vmax.f32 %v357, 0.0
        %v368 = vpack.c.bf16 %v361, %v360
        %v369 = vpack.c.bf16 %v363, %v362
        %v370 = vpack.c.bf16 %v365, %v364
        %v371 = vpack.c.bf16 %v367, %v366
        %v372 = vld [vmem:[%s3] sm:$0xf]
        %v373 = vld [vmem:[%s3 + $0x4] sm:$0xf]
        %v374 = vld [vmem:[%s3 + $0x8] sm:$0xf]
        %v375 = vld [vmem:[%s3 + $0xc] sm:$0xf]
        %v376 = vld [vmem:[%s3 + $0x10] sm:$0xf]
        %v377 = vld [vmem:[%s3 + $0x14] sm:$0xf]
        %v378 = vld [vmem:[%s3 + $0x18] sm:$0xf]
        %v379 = vld [vmem:[%s3 + $0x1c] sm:$0xf]
        %v380 = vld [vmem:[%s3 + $0x20] sm:$0xf]
        %v381 = vld [vmem:[%s3 + $0x24] sm:$0xf]
        %v382 = vld [vmem:[%s3 + $0x28] sm:$0xf]
        %v383 = vld [vmem:[%s3 + $0x2c] sm:$0xf]
        %v384 = vld [vmem:[%s3 + $0x30] sm:$0xf]
        %v385 = vld [vmem:[%s3 + $0x34] sm:$0xf]
        %v386 = vld [vmem:[%s3 + $0x38] sm:$0xf]
        %v387 = vld [vmem:[%s3 + $0x3c] sm:$0xf]
        %v404 = vunpack.c.l.b16 %v372
        %v405 = vunpack.c.l.b16 %v373
        %v406 = vunpack.c.l.b16 %v374
        %v407 = vunpack.c.l.b16 %v375
        %v408 = vunpack.c.l.b16 %v376
        %v409 = vunpack.c.l.b16 %v377
        %v410 = vunpack.c.l.b16 %v378
        %v411 = vunpack.c.l.b16 %v379
        %v412 = vunpack.c.l.b16 %v380
        %v413 = vunpack.c.l.b16 %v381
        %v414 = vunpack.c.l.b16 %v382
        %v415 = vunpack.c.l.b16 %v383
        %v416 = vunpack.c.l.b16 %v384
        %v417 = vunpack.c.l.b16 %v385
        %v418 = vunpack.c.l.b16 %v386
        %v419 = vunpack.c.l.b16 %v387
        %v420 = vpack.c.b16 %v405, %v404
        %v421 = vpack.c.b16 %v407, %v406
        %v422 = vpack.c.b16 %v409, %v408
        %v423 = vpack.c.b16 %v411, %v410
        %v424 = vpack.c.b16 %v413, %v412
        %v425 = vpack.c.b16 %v415, %v414
        %v426 = vpack.c.b16 %v417, %v416
        %v427 = vpack.c.b16 %v419, %v418
        %436 = vmatprep.subr.bf16.mxu0 0
        %437 = vmatpush1.bf16.msra.mxu0 %v427
        %438 = vmatprep.subr.bf16.mxu0 0
        %439 = vmatpush1.bf16.msra.mxu0 %v426
        %440 = vmatprep.subr.bf16.mxu0 0
        %441 = vmatpush1.bf16.msra.mxu0 %v425
        %442 = vmatprep.subr.bf16.mxu0 0
        %443 = vmatpush1.bf16.msra.mxu0 %v424
        %444 = vmatprep.subr.bf16.mxu0 0
        %445 = vmatpush1.bf16.msra.mxu0 %v423
        %446 = vmatprep.subr.bf16.mxu0 0
        %447 = vmatpush1.bf16.msra.mxu0 %v422
        %448 = vmatprep.subr.bf16.mxu0 0
        %449 = vmatpush1.bf16.msra.mxu0 %v421
        %450 = vmatprep.subr.bf16.mxu0 0
        %451 = vmatpush1.bf16.msra.mxu0 %v420
        %452 = vmatprep.subr.bf16.mxu0 0
        %453 = vmatpush2.bf16.msra.mxu0 0
        %454 = vmatprep.subr.bf16.mxu0 0
        %455 = vmatpush2.bf16.msra.mxu0 0
        %456 = vmatprep.subr.bf16.mxu0 0
        %457 = vmatpush2.bf16.msra.mxu0 0
        %458 = vmatprep.subr.bf16.mxu0 0
        %459 = vmatpush2.bf16.msra.mxu0 0
        %460 = vmatprep.subr.bf16.mxu0 0
        %461 = vmatpush2.bf16.msra.mxu0 0
        %462 = vmatprep.subr.bf16.mxu0 0
        %463 = vmatpush2.bf16.msra.mxu0 0
        %464 = vmatprep.subr.bf16.mxu0 0
        %465 = vmatpush2.bf16.msra.mxu0 0
        %466 = vmatprep.subr.bf16.mxu0 0
        %467 = vmatpush2.bf16.msra.mxu0 0
        %468 = vmatprep.mubr.bf16.mxu0 0
        %469 = vmatmul.mubr.bf16.gmra.mxu0 %v368
        %v470 = vpop.f32.mrf.mxu0
        %v471 = vadd.f32 0.0, %v470
        %v472 = vpop.f32.mrf.mxu0
        %v473 = vpop.f32.mrf.mxu0
        %v474 = vadd.f32 0.0, %v473
        %v475 = vpop.f32.mrf.mxu0
        %476 = vmatprep.mubr.bf16.mxu0 0
        %477 = vmatmul.mubr.bf16.gmra.mxu0 %v369
        %v478 = vpop.f32.mrf.mxu0
        %v479 = vadd.f32 0.0, %v478
        %v480 = vpop.f32.mrf.mxu0
        %v481 = vpop.f32.mrf.mxu0
        %v482 = vadd.f32 0.0, %v481
        %v483 = vpop.f32.mrf.mxu0
        %484 = vmatprep.mubr.bf16.mxu0 0
        %485 = vmatmul.mubr.bf16.gmra.mxu0 %v370
        %v486 = vpop.f32.mrf.mxu0
        %v487 = vadd.f32 0.0, %v486
        %v488 = vpop.f32.mrf.mxu0
        %v489 = vpop.f32.mrf.mxu0
        %v490 = vadd.f32 0.0, %v489
        %v491 = vpop.f32.mrf.mxu0
        %492 = vmatprep.mubr.bf16.mxu0 0
        %493 = vmatmul.mubr.bf16.gmra.mxu0 %v371
        %v494 = vpop.f32.mrf.mxu0
        %v495 = vadd.f32 0.0, %v494
        %v496 = vpop.f32.mrf.mxu0
        %v497 = vpop.f32.mrf.mxu0
        %v498 = vadd.f32 0.0, %v497
        %v499 = vpop.f32.mrf.mxu0
        %500 = vdwg.mxu0
        %v501 = vld [vmem:[%s4] sm:$0x1]
        %v503 = vlaneseq
        %v504 = vshrl.u32 %v503, 7
        %v505 = vsub.s32 0, %v504
        %v506 = vrot.slane %v501, %v505
        %v508 = vadd.f32 %v471, %v506
        %v509 = vadd.f32 %v474, %v506
        %v510 = vadd.f32 %v479, %v506
        %v511 = vadd.f32 %v482, %v506
        %v512 = vadd.f32 %v487, %v506
        %v513 = vadd.f32 %v490, %v506
        %v514 = vadd.f32 %v495, %v506
        %v515 = vadd.f32 %v498, %v506
        %vm516 = vcmask 64512
        %517 = vst.msk [vmem:[%s226] sm:$0xff] %vm516, %v508
        %518 = vst.msk [vmem:[%s226 + $0x8] sm:$0xff] %vm516, %v509
        %519 = vst.msk [vmem:[%s226 + $0x10] sm:$0xff] %vm516, %v510
        %520 = vst.msk [vmem:[%s226 + $0x18] sm:$0xff] %vm516, %v511
        %521 = vst.msk [vmem:[%s226 + $0x20] sm:$0xff] %vm516, %v512
        %522 = vst.msk [vmem:[%s226 + $0x28] sm:$0xff] %vm516, %v513
        %523 = vst.msk [vmem:[%s226 + $0x30] sm:$0xff] %vm516, %v514
        %524 = vst.msk [vmem:[%s226 + $0x38] sm:$0xff] %vm516, %v515
        %s525 = sand.u32 %s134, 1
        %s526 = sand.u32 %s134, 1
        %s527 = smul.addr %s526, 64
        %s528 = scalar_lea.vmem [#allocation2], %s527
        // Predicated region
        $region41: #{tpu_custom_call.1} parent=39 // pred_check
          %p529 = pneg %p144
        $region42: #{tpu_custom_call.1} parent=39 // pred_check_branch
          %531 = sbr.rel (%p529) target = $region44
        $region43: #{tpu_custom_call.1} parent=39 // pred_region
          %s532 = smul.u32 8, %s16
          %s533 = ssub.s32 25, %s532
          %p534 = scmp.lt.s32.totalorder %s533, 8
          %s535 = scalar_select %p534, %s533, 8
          %s536 = smul.u32 128, %s535
          %p537 = scmp.ne.s32.totalorder 0, %s536
          %s538 = smul.addr %s532, 8
          %s539 = scalar_lea.vmem %s5, %s538
          // Predicated region
          $region45: #{tpu_custom_call.1} parent=43 // pred_check
            %p540 = pneg %p537
          $region46: #{tpu_custom_call.1} parent=43 // pred_check_branch
            %542 = sbr.rel (%p540) target = $region48
          $region47: #{tpu_custom_call.1} parent=43 // pred_region
            // Predicated region
            $region49: #{tpu_custom_call.1} parent=47 // pred_check
              _
            $region50: #{tpu_custom_call.1} parent=47 // pred_check_branch
              %544 = sbr.rel (0) target = $region52
            $region51: #{tpu_custom_call.1} parent=47 // pred_region
              // Predicated region
              $region71: #{tpu_custom_call.1} parent=51 // pred_check
                _
              $region72: #{tpu_custom_call.1} parent=51 // pred_check_branch
                %608 = sbr.rel (0) target = $region74
              $region73: #{tpu_custom_call.1} parent=51 // pred_region
                %s609 = sshrl.u32 %s535, 3
                // While loop
                $region75: #{tpu_custom_call.1} parent=73 // loop_pre_header
                  _
                $region76: #{tpu_custom_call.1} parent=73 // loop_header
                  %s611 = sphi 0, %s613
                  %p612 = scmp.ge.s32.totalorder %s611, %s609
                  %s616 = sphi 0, %s637
                  %s617 = sphi %s528, %s640
                  %s618 = sphi %s539, %s641
                $region77: #{tpu_custom_call.1} parent=73 // loop_header_branch
                  %615 = sbr.rel (%p612) target = $region81
                $region78: #{tpu_custom_call.1} parent=73 // loop_body
                  %v619 = vld [vmem:[%s617] sm:$0xff]
                  %620 = vst [vmem:[%s618] sm:$0xff] %v619
                  %v621 = vld [vmem:[%s617 + $0x8] sm:$0xff]
                  %622 = vst [vmem:[%s618 + $0x8] sm:$0xff] %v621
                  %v623 = vld [vmem:[%s617 + $0x10] sm:$0xff]
                  %624 = vst [vmem:[%s618 + $0x10] sm:$0xff] %v623
                  %v625 = vld [vmem:[%s617 + $0x18] sm:$0xff]
                  %626 = vst [vmem:[%s618 + $0x18] sm:$0xff] %v625
                  %v627 = vld [vmem:[%s617 + $0x20] sm:$0xff]
                  %628 = vst [vmem:[%s618 + $0x20] sm:$0xff] %v627
                  %v629 = vld [vmem:[%s617 + $0x28] sm:$0xff]
                  %630 = vst [vmem:[%s618 + $0x28] sm:$0xff] %v629
                  %v631 = vld [vmem:[%s617 + $0x30] sm:$0xff]
                  %632 = vst [vmem:[%s618 + $0x30] sm:$0xff] %v631
                  %v633 = vld [vmem:[%s617 + $0x38] sm:$0xff]
                  %634 = vst [vmem:[%s618 + $0x38] sm:$0xff] %v633
                  %s635 = sadd.s32 1, %s616
                  %p636 = scmp.ge.s32.totalorder %s635, %s609
                  %s637 = scalar_select %p636, 0, %s635
                  %s638 = smul.u32 %s637, 64
                  %s639 = smul.u32 %s637, 64
                  %s640 = scalar_lea.vmem %s528, %s638 [#allocation2]
                  %s641 = scalar_lea.vmem %s539, %s639
                $region79: #{tpu_custom_call.1} parent=73 // loop_footer
                  %s613 = sadd.s32 %s611, 1
                $region80: #{tpu_custom_call.1} parent=73 // loop_footer_branch
                  %610 = sbr.rel target = $region76
                $region81: #{tpu_custom_call.1} parent=73 // loop_exit
                  _
                %s642 = sshrl.u32 %s535, 3
                %s643 = sand.u32 %s535, 7
                %s644 = smul.u32 %s642, 8
                %s645 = smul.u32 8, %s644
                %s646 = scalar_lea.vmem %s528, %s645 [#allocation2]
                %s647 = smul.u32 8, %s644
                %s648 = scalar_lea.vmem %s539, %s647
                // While loop
                $region82: #{tpu_custom_call.1} parent=73 // loop_pre_header
                  _
                $region83: #{tpu_custom_call.1} parent=73 // loop_header
                  %s650 = sphi 0, %s652
                  %p651 = scmp.ge.s32.totalorder %s650, %s643
                  %s655 = sphi 0, %s662
                  %s656 = sphi %s646, %s665
                  %s657 = sphi %s648, %s666
                $region84: #{tpu_custom_call.1} parent=73 // loop_header_branch
                  %654 = sbr.rel (%p651) target = $region88
                $region85: #{tpu_custom_call.1} parent=73 // loop_body
                  %v658 = vld [vmem:[%s656] sm:$0xff]
                  %659 = vst [vmem:[%s657] sm:$0xff] %v658
                  %s660 = sadd.s32 1, %s655
                  %p661 = scmp.ge.s32.totalorder %s660, %s643
                  %s662 = scalar_select %p661, 0, %s660
                  %s663 = smul.u32 %s662, 8
                  %s664 = smul.u32 %s662, 8
                  %s665 = scalar_lea.vmem %s646, %s663 [#allocation2]
                  %s666 = scalar_lea.vmem %s648, %s664
                $region86: #{tpu_custom_call.1} parent=73 // loop_footer
                  %s652 = sadd.s32 %s650, 1
                $region87: #{tpu_custom_call.1} parent=73 // loop_footer_branch
                  %649 = sbr.rel target = $region83
                $region88: #{tpu_custom_call.1} parent=73 // loop_exit
                  _
              $region74: #{tpu_custom_call.1} parent=51 // pred_fallthru
                _
              // Predicated region
              $region89: #{tpu_custom_call.1} parent=51 // pred_check
                _
              $region90: #{tpu_custom_call.1} parent=51 // pred_check_branch
                %668 = sbr.rel target = $region92
              $region91: #{tpu_custom_call.1} parent=51 // pred_region
                _
              $region92: #{tpu_custom_call.1} parent=51 // pred_fallthru
                _
            $region52: #{tpu_custom_call.1} parent=47 // pred_fallthru
              _
            // Predicated region
            $region53: #{tpu_custom_call.1} parent=47 // pred_check
              _
            $region54: #{tpu_custom_call.1} parent=47 // pred_check_branch
              %546 = sbr.rel target = $region56
            $region55: #{tpu_custom_call.1} parent=47 // pred_region
              %s548 = ssub.s32 256, 1
              %s549 = sshrl.u32 %s535, 3
              // While loop
              $region57: #{tpu_custom_call.1} parent=55 // loop_pre_header
                _
              $region58: #{tpu_custom_call.1} parent=55 // loop_header
                %s551 = sphi 0, %s553
                %p552 = scmp.ge.s32.totalorder %s551, %s549
                %s556 = sphi 0, %s577
                %s557 = sphi %s528, %s580
                %s558 = sphi %s539, %s581
              $region59: #{tpu_custom_call.1} parent=55 // loop_header_branch
                %555 = sbr.rel (%p552) target = $region63
              $region60: #{tpu_custom_call.1} parent=55 // loop_body
                %v559 = vld [vmem:[%s557] sm:%s548]
                %560 = vst [vmem:[%s558] sm:%s548] %v559
                %v561 = vld [vmem:[%s557 + $0x8] sm:%s548]
                %562 = vst [vmem:[%s558 + $0x8] sm:%s548] %v561
                %v563 = vld [vmem:[%s557 + $0x10] sm:%s548]
                %564 = vst [vmem:[%s558 + $0x10] sm:%s548] %v563
                %v565 = vld [vmem:[%s557 + $0x18] sm:%s548]
                %566 = vst [vmem:[%s558 + $0x18] sm:%s548] %v565
                %v567 = vld [vmem:[%s557 + $0x20] sm:%s548]
                %568 = vst [vmem:[%s558 + $0x20] sm:%s548] %v567
                %v569 = vld [vmem:[%s557 + $0x28] sm:%s548]
                %570 = vst [vmem:[%s558 + $0x28] sm:%s548] %v569
                %v571 = vld [vmem:[%s557 + $0x30] sm:%s548]
                %572 = vst [vmem:[%s558 + $0x30] sm:%s548] %v571
                %v573 = vld [vmem:[%s557 + $0x38] sm:%s548]
                %574 = vst [vmem:[%s558 + $0x38] sm:%s548] %v573
                %s575 = sadd.s32 1, %s556
                %p576 = scmp.ge.s32.totalorder %s575, %s549
                %s577 = scalar_select %p576, 0, %s575
                %s578 = smul.u32 %s577, 64
                %s579 = smul.u32 %s577, 64
                %s580 = scalar_lea.vmem %s528, %s578 [#allocation2]
                %s581 = scalar_lea.vmem %s539, %s579
              $region61: #{tpu_custom_call.1} parent=55 // loop_footer
                %s553 = sadd.s32 %s551, 1
              $region62: #{tpu_custom_call.1} parent=55 // loop_footer_branch
                %550 = sbr.rel target = $region58
              $region63: #{tpu_custom_call.1} parent=55 // loop_exit
                _
              %s582 = sshrl.u32 %s535, 3
              %s583 = sand.u32 %s535, 7
              %s584 = smul.u32 %s582, 8
              %s585 = smul.u32 8, %s584
              %s586 = scalar_lea.vmem %s528, %s585 [#allocation2]
              %s587 = smul.u32 8, %s584
              %s588 = scalar_lea.vmem %s539, %s587
              // While loop
              $region64: #{tpu_custom_call.1} parent=55 // loop_pre_header
                _
              $region65: #{tpu_custom_call.1} parent=55 // loop_header
                %s590 = sphi 0, %s592
                %p591 = scmp.ge.s32.totalorder %s590, %s583
                %s595 = sphi 0, %s602
                %s596 = sphi %s586, %s605
                %s597 = sphi %s588, %s606
              $region66: #{tpu_custom_call.1} parent=55 // loop_header_branch
                %594 = sbr.rel (%p591) target = $region70
              $region67: #{tpu_custom_call.1} parent=55 // loop_body
                %v598 = vld [vmem:[%s596] sm:%s548]
                %599 = vst [vmem:[%s597] sm:%s548] %v598
                %s600 = sadd.s32 1, %s595
                %p601 = scmp.ge.s32.totalorder %s600, %s583
                %s602 = scalar_select %p601, 0, %s600
                %s603 = smul.u32 %s602, 8
                %s604 = smul.u32 %s602, 8
                %s605 = scalar_lea.vmem %s586, %s603 [#allocation2]
                %s606 = scalar_lea.vmem %s588, %s604
              $region68: #{tpu_custom_call.1} parent=55 // loop_footer
                %s592 = sadd.s32 %s590, 1
              $region69: #{tpu_custom_call.1} parent=55 // loop_footer_branch
                %589 = sbr.rel target = $region65
              $region70: #{tpu_custom_call.1} parent=55 // loop_exit
                _
            $region56: #{tpu_custom_call.1} parent=47 // pred_fallthru
              _
          $region48: #{tpu_custom_call.1} parent=43 // pred_fallthru
            _
          %669 = vnop
        $region44: #{tpu_custom_call.1} parent=39 // pred_fallthru
          _
      $region40: #{tpu_custom_call.1} parent=5 // pred_fallthru
        _
      %p670 = scmp.le.s32.totalorder 2, %s11
      // Predicated region
      $region93: #{tpu_custom_call.1} parent=5 // pred_check
        %p671 = pneg %p670
      $region94: #{tpu_custom_call.1} parent=5 // pred_check_branch
        %673 = sbr.rel (%p671) target = $region96
      $region95: #{tpu_custom_call.1} parent=5 // pred_region
        %s674 = ssub.s32 %s11, 2
        // Predicated region
        $region97: #{tpu_custom_call.1} parent=95 // pred_check
          %p675 = pneg %p150
        $region98: #{tpu_custom_call.1} parent=95 // pred_check_branch
          %677 = sbr.rel (%p675) target = $region100
        $region99: #{tpu_custom_call.1} parent=95 // pred_region
          %s678 = sand.u32 %s135, 1
          %s679 = sand.u32 %s135, 1
          %s680 = smul.addr %s679, 64
          %s681 = scalar_lea.vmem [#allocation2], %s680
        $region100: #{tpu_custom_call.1} parent=95 // pred_fallthru
          _
      $region96: #{tpu_custom_call.1} parent=5 // pred_fallthru
        _
    $region6: #{tpu_custom_call.1} parent=1 // loop_footer
      %s15 = sadd.s32 1, %s11
    $region7: #{tpu_custom_call.1} parent=1 // loop_footer_branch
      %10 = sbr.rel target = $region3
    $region8: #{tpu_custom_call.1} parent=1 // loop_exit
      _

</llo_original>
